<compile_context>
chip_gen: v7x
topology: tpu7x:2x2x1
jax: 0.10.0
libtpu: 0.0.40
codegen_flags: <defaults>
</compile_context>

<pallas_src>
import functools

import jax
import jax.numpy as jnp
from jax.experimental import pallas as pl
from jax.experimental.pallas import tpu as pltpu


def _round_up(x: int, m: int) -> int:
    return ((x + m - 1) // m) * m


def _choose_tile_rows(M: int, E: int, itemsize: int) -> int:
    """Pick a row tile: ~2 MiB per buffer per step, 6 live buffers under ~40 MiB."""
    row_bytes = E * itemsize
    target_bytes = 2 << 20          # per-buffer per-step data volume target
    vmem_budget = 40 << 20          # headroom under the 48 MiB limit we request
    tm = max(1, target_bytes // row_bytes)
    tm = min(tm, max(1, vmem_budget // (6 * row_bytes)))  # 3 arrays x 2 buffers
    tm = max(8, (tm // 8) * 8)      # sublane-aligned
    return int(min(tm, _round_up(M, 8)))


def _highway_kernel(before_ref, after_ref, w_ref, b_ref, out_ref):
    before = before_ref[...]                      # (tm, E)
    after = after_ref[...]                        # (tm, E)

    # Gate logits: VPU multiply against the (1, E) weight row + XLU lane
    # reduce; single f32 upcast of `before`, reused by the f32 blend path.
    before_f32 = before.astype(jnp.float32)
    logits = jnp.sum(before_f32 * w_ref[...], axis=-1, keepdims=True)
    logits = logits + b_ref[0, 0]                 # scalar bias from SMEM
    g = jax.nn.sigmoid(logits)                    # (tm, 1) f32

    if before.dtype == jnp.bfloat16:
        # bf16 VALUs (v6e/v7x): keep the dominant elementwise blend in bf16.
        gb = g.astype(jnp.bfloat16)
        omg = (1.0 - g).astype(jnp.bfloat16)
        out = before * gb + after * omg
    else:
        out = before_f32 * g + after.astype(jnp.float32) * (1.0 - g)

    out_ref[...] = out.astype(out_ref.dtype)


@functools.partial(jax.jit, static_argnames=("tile_rows",))
def highway_block(before, after, gate_w, gate_b, *, tile_rows=None):
    """before, after: (B, S, E).  gate_w: (1, E) or (E, 1) or (E,).  gate_b: (1,) or scalar."""
    assert before.shape == after.shape
    B, S, E = before.shape
    M = B * S
    dtype = before.dtype
    itemsize = jnp.dtype(dtype).itemsize

    # Normalize gate params (PyTorch nn.Linear(E, 1): weight (1, E), bias (1,)).
    w_row = jnp.asarray(gate_w, jnp.float32).reshape(1, E)
    b_smem = jnp.asarray(gate_b, jnp.float32).reshape(1, 1)

    # Row tiling: many grid steps -> software pipelining + megacore split.
    if tile_rows is None:
        tm = _choose_tile_rows(M, E, itemsize)
    else:
        tm = _round_up(int(tile_rows), 8)
    tm = min(tm, _round_up(M, 8))
    M_pad = _round_up(M, tm)
    grid = (M_pad // tm,)

    before2d = before.reshape(M, E)
    after2d = after.reshape(M, E)
    if M_pad != M:
        pad = M_pad - M
        before2d = jnp.pad(before2d, ((0, pad), (0, 0)))
        after2d = jnp.pad(after2d, ((0, pad), (0, 0)))

    out2d = pl.pallas_call(
        _highway_kernel,
        out_shape=jax.ShapeDtypeStruct((M_pad, E), dtype),
        grid_spec=pltpu.PrefetchScalarGridSpec(
            num_scalar_prefetch=0,
            grid=grid,
            in_specs=[
                pl.BlockSpec((tm, E), lambda i: (i, 0)),   # before rows
                pl.BlockSpec((tm, E), lambda i: (i, 0)),   # after rows
                pl.BlockSpec((1, E), lambda i: (0, 0)),    # gate weight row (shared)
                pl.BlockSpec(memory_space=pltpu.MemorySpace.SMEM),  # bias scalar
            ],
            out_specs=pl.BlockSpec((tm, E), lambda i: (i, 0)),
        ),
        compiler_params=pltpu.CompilerParams(
            dimension_semantics=("parallel",),
            vmem_limit_bytes=48 << 20,
        ),
    )(before2d, after2d, w_row, b_smem)

    return out2d[:M].reshape(B, S, E)


def reference(before, after, gate_w, gate_b):
    E = before.shape[-1]
    w = jnp.asarray(gate_w, jnp.float32).reshape(E, 1)
    b = jnp.asarray(gate_b, jnp.float32).reshape(())
    g = jax.nn.sigmoid(before.astype(jnp.float32) @ w + b)
    out = before.astype(jnp.float32) * g + after.astype(jnp.float32) * (1.0 - g)
    return out.astype(before.dtype)


if __name__ == "__main__":
    B, S, E = 2, 8, 32
    key = jax.random.PRNGKey(0)
    k1, k2, k3, k4 = jax.random.split(key, 4)

    before = jax.random.normal(k1, (B, S, E), dtype=jnp.float32)
    after = jax.random.normal(k2, (B, S, E), dtype=jnp.float32)

    # nn.Linear(E, 1) params: weight (1, E), bias (1,), deterministic init.
    gate_w = jax.random.normal(k3, (1, E), dtype=jnp.float32) * (1.0 / jnp.sqrt(E))
    gate_b = jax.random.normal(k4, (1,), dtype=jnp.float32) * 0.01

    ref = reference(before, after, gate_w, gate_b)

    # Auto-sized tile (single step at this tiny demo size).
    out_auto = jax.block_until_ready(highway_block(before, after, gate_w, gate_b))
    # Explicit small tile to exercise the multi-step pipelined grid (grid=(2,)).
    out_tiled = jax.block_until_ready(
        highway_block(before, after, gate_w, gate_b, tile_rows=8))

    assert out_auto.shape == (B, S, E)
    assert jnp.allclose(out_auto, ref, atol=1e-5, rtol=1e-5)
    assert jnp.allclose(out_tiled, ref, atol=1e-5, rtol=1e-5)

    print("KERNEL_OK")
</pallas_src>

<mosaic_0001>
module attributes {stable_mosaic.version = 11 : i64} {
  func.func @_highway_kernel(%arg0: i32, %arg1: memref<16x32xf32, #tpu.memory_space<vmem>>, %arg2: memref<16x32xf32, #tpu.memory_space<vmem>>, %arg3: memref<1x32xf32, #tpu.memory_space<vmem>>, %arg4: memref<1x1xf32, #tpu.memory_space<smem>>, %arg5: memref<16x32xf32, #tpu.memory_space<vmem>>) attributes {dimension_semantics = [#tpu.dimension_semantics<parallel>], iteration_bounds = array<i64: 1>, scalar_prefetch = 0 : i64, scratch_operands = 0 : i64, tpu.core_type = #tpu.core_type<tc>, window_params = [{transform_indices = @transform_0, window_bounds = array<i64: 16, 32>}, {transform_indices = @transform_1, window_bounds = array<i64: 16, 32>}, {pipeline_mode = #tpu.pipeline_mode<synchronous>, transform_indices = @transform_2, window_bounds = array<i64: 1, 32>}, {transform_indices = @transform_3, window_bounds = array<i64: 1, 1>}, {transform_indices = @transform_4, window_bounds = array<i64: 16, 32>}]} {
    %c0 = arith.constant 0 : index
    %c0_0 = arith.constant 0 : index
    %0 = vector.load %arg1[%c0, %c0_0] : memref<16x32xf32, #tpu.memory_space<vmem>>, vector<16x32xf32>
    %c0_1 = arith.constant 0 : index
    %c0_2 = arith.constant 0 : index
    %1 = vector.load %arg2[%c0_1, %c0_2] : memref<16x32xf32, #tpu.memory_space<vmem>>, vector<16x32xf32>
    %c0_3 = arith.constant 0 : index
    %c0_4 = arith.constant 0 : index
    %2 = vector.load %arg3[%c0_3, %c0_4] : memref<1x32xf32, #tpu.memory_space<vmem>>, vector<1x32xf32>
    %3 = vector.broadcast %2 : vector<1x32xf32> to vector<16x32xf32>
    %4 = arith.mulf %0, %3 : vector<16x32xf32>
    %cst = arith.constant dense<0.000000e+00> : vector<16xf32>
    %5 = vector.multi_reduction <add>, %4, %cst [1] : vector<16x32xf32> to vector<16xf32>
    %6 = vector.shape_cast %5 : vector<16xf32> to vector<16x1xf32>
    %c0_5 = arith.constant 0 : index
    %c0_6 = arith.constant 0 : index
    %7 = memref.load %arg4[%c0_5, %c0_6] : memref<1x1xf32, #tpu.memory_space<smem>>
    %8 = vector.broadcast %7 : f32 to vector<16x1xf32>
    %9 = arith.addf %6, %8 : vector<16x1xf32>
    %10 = arith.negf %9 : vector<16x1xf32>
    %11 = math.exp %10 : vector<16x1xf32>
    %cst_7 = arith.constant 1.000000e+00 : f32
    %12 = vector.broadcast %cst_7 : f32 to vector<16x1xf32>
    %13 = arith.addf %12, %11 : vector<16x1xf32>
    %14 = arith.divf %12, %13 : vector<16x1xf32>
    %15 = vector.broadcast %14 : vector<16x1xf32> to vector<16x32xf32>
    %16 = arith.mulf %0, %15 : vector<16x32xf32>
    %cst_8 = arith.constant 1.000000e+00 : f32
    %17 = vector.broadcast %cst_8 : f32 to vector<16x1xf32>
    %18 = arith.subf %17, %14 : vector<16x1xf32>
    %19 = vector.broadcast %18 : vector<16x1xf32> to vector<16x32xf32>
    %20 = arith.mulf %1, %19 : vector<16x32xf32>
    %21 = arith.addf %16, %20 : vector<16x32xf32>
    %c0_9 = arith.constant 0 : index
    %c0_10 = arith.constant 0 : index
    %22 = vector.load %arg5[%c0_9, %c0_10] : memref<16x32xf32, #tpu.memory_space<vmem>>, vector<16x32xf32>
    tpu.vector_store %arg5[%c0_9, %c0_10], %21 {strides = array<i32>} : memref<16x32xf32, #tpu.memory_space<vmem>>, vector<16x32xf32>,
    return
  }
  func.func @transform_0(%arg0: i32) -> (i32, i32) {
    %c0_i32 = arith.constant 0 : i32
    %c0_i32_0 = arith.constant 0 : i32
    return %arg0, %c0_i32 : i32, i32
  }
  func.func @transform_1(%arg0: i32) -> (i32, i32) {
    %c0_i32 = arith.constant 0 : i32
    %c0_i32_0 = arith.constant 0 : i32
    return %arg0, %c0_i32 : i32, i32
  }
  func.func @transform_2(%arg0: i32) -> (i32, i32) {
    %c0_i32 = arith.constant 0 : i32
    %c0_i32_0 = arith.constant 0 : i32
    %c0_i32_1 = arith.constant 0 : i32
    return %c0_i32, %c0_i32_0 : i32, i32
  }
  func.func @transform_3(%arg0: i32) -> (i32, i32) {
    %c0_i32 = arith.constant 0 : i32
    %c0_i32_0 = arith.constant 0 : i32
    %c0_i32_1 = arith.constant 0 : i32
    return %c0_i32, %c0_i32_0 : i32, i32
  }
  func.func @transform_4(%arg0: i32) -> (i32, i32) {
    %c0_i32 = arith.constant 0 : i32
    %c0_i32_0 = arith.constant 0 : i32
    return %arg0, %c0_i32 : i32, i32
  }
}

</mosaic_0001>

<llo_original>
// kernel: highway_block.1
$region0: #{highway_block.1}
  #allocation0 [shape = 'u32[]', space=smem, size = 0x4, offset = 0x4, fixed_abs, tag = 'smem constant byte address 0x4 - core index']
  #allocation1 [shape = 'u32[144,128]{1,0:T(1,128)}', space=vmem, size = 0x12000, scoped, tag = 'internal scratch']
  #allocation2 [shape = 'f32[1,1]{1,0:T(1,128)S(6)}', space=smem, size = 0x200, scoped, tag = 'scoped memory for highway_block.1']
  %s0 = inlined_call_operand.hbm [shape: f32[16,32], index: 0, kind: input, shape index: {}]
  %s1 = inlined_call_operand.vmem [shape: f32[16,32], index: 1, kind: input, shape index: {}]
  %s2 = inlined_call_operand.vmem [shape: f32[1,32], index: 2, kind: input, shape index: {}]
  %s3 = inlined_call_operand.<no memory space> [shape: f32[1,1], index: 3, kind: input, shape index: {}]
  %s4 = inlined_call_operand.hbm [shape: f32[16,32], index: 4, kind: output, shape index: {}]
  %s5 = sld [smem:[#allocation0]]
  $region30: #{highway_block.1} parent=0
    _
  %s7 = ssub.s32 1, %s5
  %s8 = scalar_select 0, %s7, %s5
  %9 = sst [smem:[#allocation2]] %s3
  $region1: #{highway_block.1} parent=0
    #allocation3 [shape = 'u8[8192]{0}', space=vmem, size = 0x2000, scoped, tag = 'input window, operand 0, single buffered']
    #allocation4 [shape = 's32[1]{0}', space=sflag, size = 0x4, scoped, tag = 'scoped memory for highway_block.1']
    #allocation5 [shape = 's32[1]{0}', space=sflag, size = 0x4, scoped, tag = 'scoped memory for highway_block.1']
    #allocation6 [shape = 'u8[8192]{0}', space=vmem, size = 0x2000, scoped, tag = 'output window, operand 0, single buffered']
    %10 = vsyncpa [#allocation4], 0
    %11 = vsyncpa [#allocation5], 0
    // Predicated region
    $region2: #{highway_block.1} parent=1 // pred_check
      _
    $region3: #{highway_block.1} parent=1 // pred_check_branch
      %13 = sbr.rel (0) target = $region5
    $region4: #{highway_block.1} parent=1 // pred_region
      %s15 = ssub.s32 256, 256
      %16 = vsyncadd [#allocation4], %s15
      %s17 = sshll.u32 [#allocation3], 4
      %s18 = int_to_ptr.vmem [resolvable:$true] %s17
      %23 = dma.hbm_to_vmem [thread:$0]  %s0, 256, %s18, [#allocation4], 128, 128, 8
    $region5: #{highway_block.1} parent=1 // pred_fallthru
      _
    // Predicated region
    $region6: #{highway_block.1} parent=1 // pred_check
      _
    $region7: #{highway_block.1} parent=1 // pred_check_branch
      %25 = sbr.rel (0) target = $region9
    $region8: #{highway_block.1} parent=1 // pred_region
      _
    $region9: #{highway_block.1} parent=1 // pred_fallthru
      _
    // Predicated region
    $region10: #{highway_block.1} parent=1 // pred_check
      _
    $region11: #{highway_block.1} parent=1 // pred_check_branch
      %27 = sbr.rel (0) target = $region13
    $region12: #{highway_block.1} parent=1 // pred_region
      _
    $region13: #{highway_block.1} parent=1 // pred_fallthru
      _
    // Predicated region
    $region14: #{highway_block.1} parent=1 // pred_check
      _
    $region15: #{highway_block.1} parent=1 // pred_check_branch
      %29 = sbr.rel (0) target = $region17
    $region16: #{highway_block.1} parent=1 // pred_region
      _
    $region17: #{highway_block.1} parent=1 // pred_fallthru
      _
    // Predicated region
    $region18: #{highway_block.1} parent=1 // pred_check
      _
    $region19: #{highway_block.1} parent=1 // pred_check_branch
      %31 = sbr.rel (0) target = $region21
    $region20: #{highway_block.1} parent=1 // pred_region
      %32 = dma.done [#allocation4], 256
    $region21: #{highway_block.1} parent=1 // pred_fallthru
      _
    %v33 = vld [vmem:[#allocation3] sm:$0xff]
    %v34 = vld [vmem:[#allocation3 + $0x8] sm:$0xff]
    %v35 = vld [vmem:[%s1] sm:$0xff]
    %v36 = vld [vmem:[%s1 + $0x8] sm:$0xff]
    %v37 = vld [vmem:[%s2] sm:$0x1]
    %v39 = vlaneseq
    %v40 = vshrl.u32 %v39, 7
    %v41 = vsub.s32 0, %v40
    %v42 = vrot.slane %v37, %v41
    %v44 = vmul.f32 %v33, %v42
    %v45 = vmul.f32 %v34, %v42
    %vm46 = vcmask 261120
    %v47 = vsel %vm46, %v44, 0.0
    %48 = vadd.xlane.f32.xlu0 %v47
    %v49 = vpop.xlane.xlu0 %48
    %v50 = vsel %vm46, %v45, 0.0
    %51 = vadd.xlane.f32.xlu0 %v50
    %v52 = vpop.xlane.xlu0 %51
    %s53 = sld [smem:[#allocation2]]
    %v54 = vstv %s53
    %v55 = vadd.f32 %v49, %v54
    %v56 = vadd.f32 %v52, %v54
    %v57 = vxor.u32 %v55, 2147483648
    %v58 = vxor.u32 %v56, 2147483648
    %v59 = vmul.f32 %v57, 1.442695
    %v60 = vpow.pop %v59
    %v61 = vmul.f32 %v58, 1.442695
    %v62 = vpow.pop %v61
    %v63 = vadd.f32 %v60, 1.0
    %v64 = vadd.f32 %v62, 1.0
    %v65 = vrcp.pop %v63
    %v66 = vmul.f32 1.0, %v65
    %v67 = vrcp.pop %v64
    %v68 = vmul.f32 1.0, %v67
    %v69 = vmul.f32 %v33, %v66
    %v70 = vmul.f32 %v34, %v68
    %v71 = vsub.f32 1.0, %v66
    %v72 = vsub.f32 1.0, %v68
    %v73 = vmul.f32 %v35, %v71
    %v74 = vmul.f32 %v36, %v72
    %v75 = vadd.f32 %v69, %v73
    %v76 = vadd.f32 %v70, %v74
    %77 = vst.msk [vmem:[#allocation6] sm:$0xff] %vm46, %v75
    %78 = vst.msk [vmem:[#allocation6 + $0x8] sm:$0xff] %vm46, %v76
    // Predicated region
    $region22: #{highway_block.1} parent=1 // pred_check
      _
    $region23: #{highway_block.1} parent=1 // pred_check_branch
      %80 = sbr.rel (0) target = $region25
    $region24: #{highway_block.1} parent=1 // pred_region
      %s82 = ssub.s32 256, 256
      %83 = vsyncadd [#allocation5], %s82
      %s84 = sshll.u32 [#allocation6], 4
      %s85 = int_to_ptr.vmem [resolvable:$true] %s84
      %90 = dma.vmem_to_hbm [thread:$0]  %s85, 256, %s4, [#allocation5], 128, 128, 8
    $region25: #{highway_block.1} parent=1 // pred_fallthru
      _
    // Predicated region
    $region26: #{highway_block.1} parent=1 // pred_check
      _
    $region27: #{highway_block.1} parent=1 // pred_check_branch
      %92 = sbr.rel (0) target = $region29
    $region28: #{highway_block.1} parent=1 // pred_region
      %93 = dma.done [#allocation5], 256
    $region29: #{highway_block.1} parent=1 // pred_fallthru
      _
    %94 = vsyncpa [#allocation4], 1
    %95 = vsyncpa [#allocation5], 1

</llo_original>
